<compile_context>
chip_gen: v7x
topology: tpu7x:2x2x1
jax: 0.10.0
libtpu: 0.0.40
codegen_flags: <defaults>
</compile_context>

<pallas_src>
import jax
import jax.numpy as jnp
from jax.experimental import pallas as pl
from jax.experimental.pallas import tpu as pltpu


# ---------------------------------------------------------------------------
# Host-side slab packing: stack 2-D blocks into one (rows, lane_w) slab.
# Row offsets are Python ints (static) so the kernel can slice with free ref views.
# ---------------------------------------------------------------------------
def _pack_rows(blocks, lane_w, row_align, dtype):
    parts, offs, r = [], [], 0
    for blk in blocks:
        rows = -(-blk.shape[0] // row_align) * row_align
        parts.append(jnp.pad(blk.astype(dtype),
                             ((0, rows - blk.shape[0]), (0, lane_w - blk.shape[1]))))
        offs.append(r)
        r += rows
    return jnp.concatenate(parts, axis=0), offs


# ---------------------------------------------------------------------------
# Fused forward: whole batch in one pallas_call (no grid).
# ---------------------------------------------------------------------------
def graph_autoencoder_forward(x, adj, p):
    B, N, C = x.shape
    H = p["w1e"].shape[1]
    F = p["w2e"].shape[1]
    NF = N * F
    NB = N * B
    bf, f32 = jnp.bfloat16, jnp.float32

    lane_w = max(128, pl.cdiv(max(NB, H, F, NF, C), 128) * 128)

    # ---- host-side weight prep (cheap; in deployment pack once outside jit) ----
    eye_b = jnp.eye(B, dtype=f32)
    # interleaved row layout: row index = n*B + b
    adj_blk = jnp.kron(adj.astype(f32), eye_b)                  # (NB, NB)
    w3_blk = jnp.kron(p["w3"], eye_b)                           # (2B, NB): row o*B+b
    b3_col = jnp.repeat(p["b3"].reshape(-1), B).reshape(2 * B, 1)

    w_slab, woff = _pack_rows(
        [adj_blk, p["w1e"], p["w2e"], w3_blk, p["wca"], p["wcb"], p["w1d"], p["w2d"]],
        lane_w, 16, bf)                                         # bf16 slab, 16-row aligned
    b_slab, boff = _pack_rows(
        [p["b1e"], p["b2e"], p["bc"], p["b1d"], p["b2d"], b3_col],
        lane_w, 8, f32)                                         # f32 slab, 8-row aligned

    (R_ADJ, R_W1E, R_W2E, R_W3, R_WCA, R_WCB, R_W1D, R_W2D) = woff
    (R_B1E, R_B2E, R_BC, R_B1D, R_B2D, R_B3) = boff

    # x with batch interleaved into the node axis, cast once on host.
    x_il = jnp.transpose(x, (1, 0, 2)).reshape(NB, C).astype(bf)

    def kernel(x_ref, w_ref, b_ref, out_ref, d_sc):
        # Static slab slices (tile-aligned row offsets).
        adjb = w_ref[R_ADJ:R_ADJ + NB, 0:NB]                    # (NB, NB) block-diag adj
        w1e = w_ref[R_W1E:R_W1E + C, 0:H]
        w2e = w_ref[R_W2E:R_W2E + H, 0:F]
        w3b = w_ref[R_W3:R_W3 + 2 * B, 0:NB]
        wca = w_ref[R_WCA:R_WCA + F, 0:NF]
        wcb = w_ref[R_WCB:R_WCB + F, 0:NF]
        w1d = w_ref[R_W1D:R_W1D + F, 0:H]
        w2d = w_ref[R_W2D:R_W2D + H, 0:C]

        b1e = b_ref[R_B1E:R_B1E + 1, 0:H]
        b2e = b_ref[R_B2E:R_B2E + 1, 0:F]
        bc = b_ref[R_BC:R_BC + 1, 0:NF]
        b1d = b_ref[R_B1D:R_B1D + 1, 0:H]
        b2d = b_ref[R_B2D:R_B2D + 1, 0:C]
        b3 = b_ref[R_B3:R_B3 + 2 * B, 0:1]                      # (2B, 1)

        xb = x_ref[...]                                         # (NB, C) bf16

        # ---- Encoder GCN pair: h = relu(adj@(x@W1)+b1); z = adj@(h@W2)+b2
        s1 = jnp.dot(xb, w1e, preferred_element_type=f32)                       # (NB, H)
        h = jnp.maximum(
            jnp.dot(adjb, s1.astype(bf), preferred_element_type=f32) + b1e, 0.0)
        s2 = jnp.dot(h.astype(bf), w2e, preferred_element_type=f32)             # (NB, F)
        z = jnp.dot(adjb, s2.astype(bf), preferred_element_type=f32) + b2e      # (NB, F)

        # ---- Encoder conv3: Conv2d(N, 2, (1,1)) over the node-channel dim.
        # Channel-major rows: e[o*B + b] = W3[o] . z[batch b]
        e = jnp.dot(w3b, z.astype(bf), preferred_element_type=f32) + b3         # (2B, F)
        e0 = e[0:B, :].astype(bf)                               # channel 0, all batches
        e1 = e[B:2 * B, :].astype(bf)                           # channel 1, all batches

        # ---- Decoder conv_2d: Conv2d(2, N*F, (F,1)) == flat contraction over (c, f)
        dflat = (jnp.dot(e0, wca, preferred_element_type=f32)
                 + jnp.dot(e1, wcb, preferred_element_type=f32) + bc)           # (B, NF)

        # ---- .view(B, num_points, -1): lane->sublane unflatten.
        # dflat stays a value; N row-block stores into the single (NB, F) scratch.
        # TODO(synk): at realistic N replace this static unroll (trace-time) with a
        # fori_loop / host-side weight relayout.
        for n in range(N):
            d_sc[n * B:(n + 1) * B, :] = dflat[:, n * F:(n + 1) * F]
        d = d_sc[...].astype(bf)                                # (NB, F) bf16

        # ---- Decoder GCN pair
        t1 = jnp.dot(d, w1d, preferred_element_type=f32)                        # (NB, H)
        h2 = jnp.maximum(
            jnp.dot(adjb, t1.astype(bf), preferred_element_type=f32) + b1d, 0.0)
        t2 = jnp.dot(h2.astype(bf), w2d, preferred_element_type=f32)            # (NB, C)
        out_ref[...] = jnp.dot(adjb, t2.astype(bf), preferred_element_type=f32) + b2d

    # Advisory cost estimate for XLA's scheduler.
    flops = (2 * (NB * C * H + NB * NB * H + NB * H * F + NB * NB * F)   # encoder GCNs
             + 2 * (2 * B * NB * F)                                      # conv3
             + 2 * (B * 2 * F * NF)                                      # conv_2d
             + 2 * (NB * F * H + NB * NB * H + NB * H * C + NB * NB * C))  # decoder GCNs
    bytes_accessed = (x_il.size * 2 + w_slab.size * 2 + b_slab.size * 4 + NB * C * 4)

    vmem_spec = pl.BlockSpec(memory_space=pltpu.MemorySpace.VMEM)
    out_flat = pl.pallas_call(
        kernel,
        out_shape=jax.ShapeDtypeStruct((NB, C), f32),
        in_specs=[vmem_spec, vmem_spec, vmem_spec],
        out_specs=vmem_spec,
        scratch_shapes=[pltpu.VMEM((NB, F), f32)],   # unflattened d (only scratch)
        cost_estimate=pl.CostEstimate(flops=flops, transcendentals=0,
                                      bytes_accessed=bytes_accessed),
    )(x_il, w_slab, b_slab)

    # Undo the batch interleave (tiny host-side relayout).
    return out_flat.reshape(N, B, C).transpose(1, 0, 2)


# ---------------------------------------------------------------------------
# Pure-JAX reference (same math, same bf16 matmul operands / f32 accumulation).
# ---------------------------------------------------------------------------
def ref_forward(x, adj, p):
    bf, f32 = jnp.bfloat16, jnp.float32
    adjb = adj.astype(bf)

    def gcn(xx, w, b):
        s = jnp.einsum("bnc,ch->bnh", xx.astype(bf), w.astype(bf),
                       preferred_element_type=f32)
        return jnp.einsum("ij,bjh->bih", adjb, s.astype(bf),
                          preferred_element_type=f32) + b

    h = jnp.maximum(gcn(x, p["w1e"], p["b1e"]), 0.0)
    z = gcn(h, p["w2e"], p["b2e"])                                     # (B, N, F)
    e = (jnp.einsum("on,bnf->bof", p["w3"].astype(bf), z.astype(bf),
                    preferred_element_type=f32) + p["b3"].reshape(1, 2, 1))   # (B, 2, F)
    dflat = (jnp.einsum("bf,fm->bm", e[:, 0, :].astype(bf), p["wca"].astype(bf),
                        preferred_element_type=f32)
             + jnp.einsum("bf,fm->bm", e[:, 1, :].astype(bf), p["wcb"].astype(bf),
                          preferred_element_type=f32)
             + p["bc"])                                                # (B, N*F)
    d = dflat.reshape(x.shape[0], adj.shape[0], -1)                    # (B, N, F)
    h2 = jnp.maximum(gcn(d, p["w1d"], p["b1d"]), 0.0)
    return gcn(h2, p["w2d"], p["b2d"])


def init_params(key, in_features, num_points, hidden_features, out_features):
    """Deterministic synthetic init following the PyTorch parameter shapes."""
    ks = jax.random.split(key, 12)
    N, H, F, C = num_points, hidden_features, out_features, in_features
    u = lambda k, shape, s: jax.random.uniform(k, shape, jnp.float32, -s, s)

    p = {}
    # Encoder GraphConvolution(C -> H), (H -> F)
    p["w1e"] = u(ks[0], (C, H), 1.0 / (H ** 0.5))
    p["b1e"] = u(ks[1], (1, H), 1.0 / (H ** 0.5))
    p["w2e"] = u(ks[2], (H, F), 1.0 / (F ** 0.5))
    p["b2e"] = u(ks[3], (1, F), 1.0 / (F ** 0.5))
    # Encoder conv3: Conv2d(N, 2, (1,1)) -> weight (2, N, 1, 1), bias (2,)
    s3 = 1.0 / (N ** 0.5)
    p["w3"] = u(ks[4], (2, N), s3)                  # weight[:, :, 0, 0]
    p["b3"] = u(ks[5], (2, 1), s3)
    # Decoder conv_2d: Conv2d(2, N*F, (F,1)) -> weight (N*F, 2, F, 1), bias (N*F,)
    # Output channel m maps to (n = m // F, f = m % F) after .view(B, N, -1),
    # i.e. n-major / f-minor — matches the in-kernel unflatten.
    sc = 1.0 / ((2 * F) ** 0.5)
    wc = u(ks[6], (N * F, 2, F), sc)                # weight[..., 0]
    p["wca"] = wc[:, 0, :].T                        # (F, N*F)
    p["wcb"] = wc[:, 1, :].T                        # (F, N*F)
    p["bc"] = u(ks[7], (1, N * F), sc)
    # Decoder GraphConvolution(F -> H), (H -> C)
    p["w1d"] = u(ks[8], (F, H), 1.0 / (H ** 0.5))
    p["b1d"] = u(ks[9], (1, H), 1.0 / (H ** 0.5))
    p["w2d"] = u(ks[10], (H, C), 1.0 / (C ** 0.5))
    p["b2d"] = u(ks[11], (1, C), 1.0 / (C ** 0.5))
    return p


if __name__ == "__main__":
    # Small, module-consistent shapes: in_features must be 2 (see NOTE at top).
    B, N, IN, H, F = 2, 8, 2, 32, 16

    key = jax.random.PRNGKey(0)
    k_x, k_adj, k_p = jax.random.split(key, 3)

    x = jax.random.normal(k_x, (B, N, IN), jnp.float32)
    adj = jax.random.uniform(k_adj, (N, N), jnp.float32)
    adj = adj / jnp.sum(adj, axis=-1, keepdims=True)   # row-normalized adjacency

    params = init_params(k_p, IN, N, H, F)

    fwd = jax.jit(graph_autoencoder_forward)
    out = jax.block_until_ready(fwd(x, adj, params))

    ref = jax.block_until_ready(ref_forward(x, adj, params))
    assert out.shape == (B, N, IN), out.shape
    assert jnp.allclose(out, ref, rtol=2e-2, atol=2e-2), "mismatch vs reference"

    print("KERNEL_OK")
</pallas_src>

<mosaic_0001>
module attributes {stable_mosaic.version = 11 : i64} {
  func.func @kernel(%arg0: memref<16x2xbf16, #tpu.memory_space<vmem>>, %arg1: memref<160x128xbf16, #tpu.memory_space<vmem>>, %arg2: memref<48x128xf32, #tpu.memory_space<vmem>>, %arg3: memref<16x2xf32, #tpu.memory_space<vmem>>, %arg4: memref<16x16xf32, #tpu.memory_space<vmem>>) attributes {dimension_semantics = [], scalar_prefetch = 0 : i64, scratch_operands = 1 : i64, tpu.core_type = #tpu.core_type<tc>} {
    %c0 = arith.constant 0 : index
    %c0_0 = arith.constant 0 : index
    %0 = vector.load %arg1[%c0, %c0_0] : memref<160x128xbf16, #tpu.memory_space<vmem>>, vector<16x16xbf16>
    %c16 = arith.constant 16 : index
    %c0_1 = arith.constant 0 : index
    %1 = vector.load %arg1[%c16, %c0_1] : memref<160x128xbf16, #tpu.memory_space<vmem>>, vector<2x32xbf16>
    %c32 = arith.constant 32 : index
    %c0_2 = arith.constant 0 : index
    %2 = vector.load %arg1[%c32, %c0_2] : memref<160x128xbf16, #tpu.memory_space<vmem>>, vector<32x16xbf16>
    %c64 = arith.constant 64 : index
    %c0_3 = arith.constant 0 : index
    %3 = vector.load %arg1[%c64, %c0_3] : memref<160x128xbf16, #tpu.memory_space<vmem>>, vector<4x16xbf16>
    %c80 = arith.constant 80 : index
    %c0_4 = arith.constant 0 : index
    %4 = vector.load %arg1[%c80, %c0_4] : memref<160x128xbf16, #tpu.memory_space<vmem>>, vector<16x128xbf16>
    %c96 = arith.constant 96 : index
    %c0_5 = arith.constant 0 : index
    %5 = vector.load %arg1[%c96, %c0_5] : memref<160x128xbf16, #tpu.memory_space<vmem>>, vector<16x128xbf16>
    %c112 = arith.constant 112 : index
    %c0_6 = arith.constant 0 : index
    %6 = vector.load %arg1[%c112, %c0_6] : memref<160x128xbf16, #tpu.memory_space<vmem>>, vector<16x32xbf16>
    %c128 = arith.constant 128 : index
    %c0_7 = arith.constant 0 : index
    %7 = vector.load %arg1[%c128, %c0_7] : memref<160x128xbf16, #tpu.memory_space<vmem>>, vector<32x2xbf16>
    %c0_8 = arith.constant 0 : index
    %c0_9 = arith.constant 0 : index
    %8 = vector.load %arg2[%c0_8, %c0_9] : memref<48x128xf32, #tpu.memory_space<vmem>>, vector<1x32xf32>
    %c8 = arith.constant 8 : index
    %c0_10 = arith.constant 0 : index
    %9 = vector.load %arg2[%c8, %c0_10] : memref<48x128xf32, #tpu.memory_space<vmem>>, vector<1x16xf32>
    %c16_11 = arith.constant 16 : index
    %c0_12 = arith.constant 0 : index
    %10 = vector.load %arg2[%c16_11, %c0_12] : memref<48x128xf32, #tpu.memory_space<vmem>>, vector<1x128xf32>
    %c24 = arith.constant 24 : index
    %c0_13 = arith.constant 0 : index
    %11 = vector.load %arg2[%c24, %c0_13] : memref<48x128xf32, #tpu.memory_space<vmem>>, vector<1x32xf32>
    %c32_14 = arith.constant 32 : index
    %c0_15 = arith.constant 0 : index
    %12 = vector.load %arg2[%c32_14, %c0_15] : memref<48x128xf32, #tpu.memory_space<vmem>>, vector<1x2xf32>
    %c40 = arith.constant 40 : index
    %c0_16 = arith.constant 0 : index
    %13 = vector.load %arg2[%c40, %c0_16] : memref<48x128xf32, #tpu.memory_space<vmem>>, vector<4x1xf32>
    %c0_17 = arith.constant 0 : index
    %c0_18 = arith.constant 0 : index
    %14 = vector.load %arg0[%c0_17, %c0_18] : memref<16x2xbf16, #tpu.memory_space<vmem>>, vector<16x2xbf16>
    %cst = arith.constant dense<0.000000e+00> : vector<16x32xf32>
    %15 = tpu.matmul %14, %1, %cst {dimension_numbers = #tpu.dot_dimension_numbers<[1], [0], [0], [1], [0, 0, 1, 1], [], []>} : vector<16x2xbf16>, vector<2x32xbf16>, vector<16x32xf32> -> vector<16x32xf32>
    %16 = arith.truncf %15 : vector<16x32xf32> to vector<16x32xbf16>
    %cst_19 = arith.constant dense<0.000000e+00> : vector<16x32xf32>
    %17 = tpu.matmul %0, %16, %cst_19 {dimension_numbers = #tpu.dot_dimension_numbers<[1], [0], [0], [1], [0, 0, 1, 1], [], []>} : vector<16x16xbf16>, vector<16x32xbf16>, vector<16x32xf32> -> vector<16x32xf32>
    %18 = vector.broadcast %8 : vector<1x32xf32> to vector<16x32xf32>
    %19 = arith.addf %17, %18 : vector<16x32xf32>
    %cst_20 = arith.constant 0.000000e+00 : f32
    %20 = vector.broadcast %cst_20 : f32 to vector<16x32xf32>
    %21 = arith.maximumf %19, %20 : vector<16x32xf32>
    %22 = arith.truncf %21 : vector<16x32xf32> to vector<16x32xbf16>
    %cst_21 = arith.constant dense<0.000000e+00> : vector<16x16xf32>
    %23 = tpu.matmul %22, %2, %cst_21 {dimension_numbers = #tpu.dot_dimension_numbers<[1], [0], [0], [1], [0, 0, 1, 1], [], []>} : vector<16x32xbf16>, vector<32x16xbf16>, vector<16x16xf32> -> vector<16x16xf32>
    %24 = arith.truncf %23 : vector<16x16xf32> to vector<16x16xbf16>
    %cst_22 = arith.constant dense<0.000000e+00> : vector<16x16xf32>
    %25 = tpu.matmul %0, %24, %cst_22 {dimension_numbers = #tpu.dot_dimension_numbers<[1], [0], [0], [1], [0, 0, 1, 1], [], []>} : vector<16x16xbf16>, vector<16x16xbf16>, vector<16x16xf32> -> vector<16x16xf32>
    %26 = vector.broadcast %9 : vector<1x16xf32> to vector<16x16xf32>
    %27 = arith.addf %25, %26 : vector<16x16xf32>
    %28 = arith.truncf %27 : vector<16x16xf32> to vector<16x16xbf16>
    %cst_23 = arith.constant dense<0.000000e+00> : vector<4x16xf32>
    %29 = tpu.matmul %3, %28, %cst_23 {dimension_numbers = #tpu.dot_dimension_numbers<[1], [0], [0], [1], [0, 0, 1, 1], [], []>} : vector<4x16xbf16>, vector<16x16xbf16>, vector<4x16xf32> -> vector<4x16xf32>
    %30 = vector.broadcast %13 : vector<4x1xf32> to vector<4x16xf32>
    %31 = arith.addf %29, %30 : vector<4x16xf32>
    %32 = vector.extract_strided_slice %31 {offsets = [0, 0], sizes = [2, 16], strides = [1, 1]} : vector<4x16xf32> to vector<2x16xf32>
    %33 = arith.truncf %32 : vector<2x16xf32> to vector<2x16xbf16>
    %34 = vector.extract_strided_slice %31 {offsets = [2, 0], sizes = [2, 16], strides = [1, 1]} : vector<4x16xf32> to vector<2x16xf32>
    %35 = arith.truncf %34 : vector<2x16xf32> to vector<2x16xbf16>
    %cst_24 = arith.constant dense<0.000000e+00> : vector<2x128xf32>
    %36 = tpu.matmul %33, %4, %cst_24 {dimension_numbers = #tpu.dot_dimension_numbers<[1], [0], [0], [1], [0, 0, 1, 1], [], []>} : vector<2x16xbf16>, vector<16x128xbf16>, vector<2x128xf32> -> vector<2x128xf32>
    %cst_25 = arith.constant dense<0.000000e+00> : vector<2x128xf32>
    %37 = tpu.matmul %35, %5, %cst_25 {dimension_numbers = #tpu.dot_dimension_numbers<[1], [0], [0], [1], [0, 0, 1, 1], [], []>} : vector<2x16xbf16>, vector<16x128xbf16>, vector<2x128xf32> -> vector<2x128xf32>
    %38 = arith.addf %36, %37 : vector<2x128xf32>
    %39 = vector.broadcast %10 : vector<1x128xf32> to vector<2x128xf32>
    %40 = arith.addf %38, %39 : vector<2x128xf32>
    %41 = vector.extract_strided_slice %40 {offsets = [0, 0], sizes = [2, 16], strides = [1, 1]} : vector<2x128xf32> to vector<2x16xf32>
    %c0_26 = arith.constant 0 : index
    %c0_27 = arith.constant 0 : index
    %42 = vector.load %arg4[%c0_26, %c0_27] : memref<16x16xf32, #tpu.memory_space<vmem>>, vector<2x16xf32>
    tpu.vector_store %arg4[%c0_26, %c0_27], %41 {strides = array<i32>} : memref<16x16xf32, #tpu.memory_space<vmem>>, vector<2x16xf32>,
    %43 = vector.extract_strided_slice %40 {offsets = [0, 16], sizes = [2, 16], strides = [1, 1]} : vector<2x128xf32> to vector<2x16xf32>
    %c2 = arith.constant 2 : index
    %c0_28 = arith.constant 0 : index
    %44 = vector.load %arg4[%c2, %c0_28] : memref<16x16xf32, #tpu.memory_space<vmem>>, vector<2x16xf32>
    tpu.vector_store %arg4[%c2, %c0_28], %43 {strides = array<i32>} : memref<16x16xf32, #tpu.memory_space<vmem>>, vector<2x16xf32>,
    %45 = vector.extract_strided_slice %40 {offsets = [0, 32], sizes = [2, 16], strides = [1, 1]} : vector<2x128xf32> to vector<2x16xf32>
    %c4 = arith.constant 4 : index
    %c0_29 = arith.constant 0 : index
    %46 = vector.load %arg4[%c4, %c0_29] : memref<16x16xf32, #tpu.memory_space<vmem>>, vector<2x16xf32>
    tpu.vector_store %arg4[%c4, %c0_29], %45 {strides = array<i32>} : memref<16x16xf32, #tpu.memory_space<vmem>>, vector<2x16xf32>,
    %47 = vector.extract_strided_slice %40 {offsets = [0, 48], sizes = [2, 16], strides = [1, 1]} : vector<2x128xf32> to vector<2x16xf32>
    %c6 = arith.constant 6 : index
    %c0_30 = arith.constant 0 : index
    %48 = vector.load %arg4[%c6, %c0_30] : memref<16x16xf32, #tpu.memory_space<vmem>>, vector<2x16xf32>
    tpu.vector_store %arg4[%c6, %c0_30], %47 {strides = array<i32>} : memref<16x16xf32, #tpu.memory_space<vmem>>, vector<2x16xf32>,
    %49 = vector.extract_strided_slice %40 {offsets = [0, 64], sizes = [2, 16], strides = [1, 1]} : vector<2x128xf32> to vector<2x16xf32>
    %c8_31 = arith.constant 8 : index
    %c0_32 = arith.constant 0 : index
    %50 = vector.load %arg4[%c8_31, %c0_32] : memref<16x16xf32, #tpu.memory_space<vmem>>, vector<2x16xf32>
    tpu.vector_store %arg4[%c8_31, %c0_32], %49 {strides = array<i32>} : memref<16x16xf32, #tpu.memory_space<vmem>>, vector<2x16xf32>,
    %51 = vector.extract_strided_slice %40 {offsets = [0, 80], sizes = [2, 16], strides = [1, 1]} : vector<2x128xf32> to vector<2x16xf32>
    %c10 = arith.constant 10 : index
    %c0_33 = arith.constant 0 : index
    %52 = vector.load %arg4[%c10, %c0_33] : memref<16x16xf32, #tpu.memory_space<vmem>>, vector<2x16xf32>
    tpu.vector_store %arg4[%c10, %c0_33], %51 {strides = array<i32>} : memref<16x16xf32, #tpu.memory_space<vmem>>, vector<2x16xf32>,
    %53 = vector.extract_strided_slice %40 {offsets = [0, 96], sizes = [2, 16], strides = [1, 1]} : vector<2x128xf32> to vector<2x16xf32>
    %c12 = arith.constant 12 : index
    %c0_34 = arith.constant 0 : index
    %54 = vector.load %arg4[%c12, %c0_34] : memref<16x16xf32, #tpu.memory_space<vmem>>, vector<2x16xf32>
    tpu.vector_store %arg4[%c12, %c0_34], %53 {strides = array<i32>} : memref<16x16xf32, #tpu.memory_space<vmem>>, vector<2x16xf32>,
    %55 = vector.extract_strided_slice %40 {offsets = [0, 112], sizes = [2, 16], strides = [1, 1]} : vector<2x128xf32> to vector<2x16xf32>
    %c14 = arith.constant 14 : index
    %c0_35 = arith.constant 0 : index
    %56 = vector.load %arg4[%c14, %c0_35] : memref<16x16xf32, #tpu.memory_space<vmem>>, vector<2x16xf32>
    tpu.vector_store %arg4[%c14, %c0_35], %55 {strides = array<i32>} : memref<16x16xf32, #tpu.memory_space<vmem>>, vector<2x16xf32>,
    %c0_36 = arith.constant 0 : index
    %c0_37 = arith.constant 0 : index
    %57 = vector.load %arg4[%c0_36, %c0_37] : memref<16x16xf32, #tpu.memory_space<vmem>>, vector<16x16xf32>
    %58 = arith.truncf %57 : vector<16x16xf32> to vector<16x16xbf16>
    %cst_38 = arith.constant dense<0.000000e+00> : vector<16x32xf32>
    %59 = tpu.matmul %58, %6, %cst_38 {dimension_numbers = #tpu.dot_dimension_numbers<[1], [0], [0], [1], [0, 0, 1, 1], [], []>} : vector<16x16xbf16>, vector<16x32xbf16>, vector<16x32xf32> -> vector<16x32xf32>
    %60 = arith.truncf %59 : vector<16x32xf32> to vector<16x32xbf16>
    %cst_39 = arith.constant dense<0.000000e+00> : vector<16x32xf32>
    %61 = tpu.matmul %0, %60, %cst_39 {dimension_numbers = #tpu.dot_dimension_numbers<[1], [0], [0], [1], [0, 0, 1, 1], [], []>} : vector<16x16xbf16>, vector<16x32xbf16>, vector<16x32xf32> -> vector<16x32xf32>
    %62 = vector.broadcast %11 : vector<1x32xf32> to vector<16x32xf32>
    %63 = arith.addf %61, %62 : vector<16x32xf32>
    %cst_40 = arith.constant 0.000000e+00 : f32
    %64 = vector.broadcast %cst_40 : f32 to vector<16x32xf32>
    %65 = arith.maximumf %63, %64 : vector<16x32xf32>
    %66 = arith.truncf %65 : vector<16x32xf32> to vector<16x32xbf16>
    %cst_41 = arith.constant dense<0.000000e+00> : vector<16x2xf32>
    %67 = tpu.matmul %66, %7, %cst_41 {dimension_numbers = #tpu.dot_dimension_numbers<[1], [0], [0], [1], [0, 0, 1, 1], [], []>} : vector<16x32xbf16>, vector<32x2xbf16>, vector<16x2xf32> -> vector<16x2xf32>
    %68 = arith.truncf %67 : vector<16x2xf32> to vector<16x2xbf16>
    %cst_42 = arith.constant dense<0.000000e+00> : vector<16x2xf32>
    %69 = tpu.matmul %0, %68, %cst_42 {dimension_numbers = #tpu.dot_dimension_numbers<[1], [0], [0], [1], [0, 0, 1, 1], [], []>} : vector<16x16xbf16>, vector<16x2xbf16>, vector<16x2xf32> -> vector<16x2xf32>
    %70 = vector.broadcast %12 : vector<1x2xf32> to vector<16x2xf32>
    %71 = arith.addf %69, %70 : vector<16x2xf32>
    %c0_43 = arith.constant 0 : index
    %c0_44 = arith.constant 0 : index
    %72 = vector.load %arg3[%c0_43, %c0_44] : memref<16x2xf32, #tpu.memory_space<vmem>>, vector<16x2xf32>
    tpu.vector_store %arg3[%c0_43, %c0_44], %71 {strides = array<i32>} : memref<16x2xf32, #tpu.memory_space<vmem>>, vector<16x2xf32>,
    return
  }
}

</mosaic_0001>

<llo_original>
// kernel: graph_autoencoder_forward.1
$region0: #{graph_autoencoder_forward.1}
  #allocation0 [shape = 'u32[]', space=smem, size = 0x4, offset = 0x4, fixed_abs, tag = 'smem constant byte address 0x4 - core index']
  #allocation1 [shape = 'u32[144,128]{1,0:T(1,128)}', space=vmem, size = 0x12000, scoped, tag = 'internal scratch']
  #allocation2 [shape = 'f32[16,16]{1,0:T(8,128)}', space=vmem, size = 0x2000, scoped, tag = 'scratch operand']
  %s0 = inlined_call_operand.vmem [shape: bf16[16,2], index: 0, kind: input, shape index: {}]
  %s1 = inlined_call_operand.vmem [shape: bf16[160,128], index: 1, kind: input, shape index: {}]
  %s2 = inlined_call_operand.vmem [shape: f32[48,128], index: 2, kind: input, shape index: {}]
  %s3 = inlined_call_operand.vmem [shape: f32[16,2], index: 3, kind: output, shape index: {}]
  %s4 = sld [smem:[#allocation0]]
  $region22: #{graph_autoencoder_forward.1} parent=0
    _
  %s6 = ssub.s32 1, %s4
  %s7 = scalar_select 0, %s6, %s4
  // Predicated region
  $region2: #{graph_autoencoder_forward.1} parent=0 // pred_check
    _
  $region3: #{graph_autoencoder_forward.1} parent=0 // pred_check_branch
    %9 = sbr.rel (0) target = $region5
  $region4: #{graph_autoencoder_forward.1} parent=0 // pred_region
    _
  $region5: #{graph_autoencoder_forward.1} parent=0 // pred_fallthru
    _
  // Predicated region
  $region6: #{graph_autoencoder_forward.1} parent=0 // pred_check
    _
  $region7: #{graph_autoencoder_forward.1} parent=0 // pred_check_branch
    %11 = sbr.rel (0) target = $region9
  $region8: #{graph_autoencoder_forward.1} parent=0 // pred_region
    _
  $region9: #{graph_autoencoder_forward.1} parent=0 // pred_fallthru
    _
  // Predicated region
  $region10: #{graph_autoencoder_forward.1} parent=0 // pred_check
    _
  $region11: #{graph_autoencoder_forward.1} parent=0 // pred_check_branch
    %13 = sbr.rel (0) target = $region13
  $region12: #{graph_autoencoder_forward.1} parent=0 // pred_region
    _
  $region13: #{graph_autoencoder_forward.1} parent=0 // pred_fallthru
    _
  %v15 = vld [vmem:[%s1] sm:$0xf]
  %v16 = vld [vmem:[%s1 + $0x4] sm:$0xf]
  %v17 = vld [vmem:[%s1 + $0x8] sm:$0x1]
  %v18 = vld [vmem:[%s1 + $0x10] sm:$0xf]
  %v19 = vld [vmem:[%s1 + $0x14] sm:$0xf]
  %v20 = vld [vmem:[%s1 + $0x18] sm:$0xf]
  %v21 = vld [vmem:[%s1 + $0x1c] sm:$0xf]
  %v22 = vld [vmem:[%s1 + $0x20] sm:$0x3]
  %v23 = vld [vmem:[%s1 + $0x28] sm:$0xf]
  %v24 = vld [vmem:[%s1 + $0x2c] sm:$0xf]
  %v25 = vld [vmem:[%s1 + $0x30] sm:$0xf]
  %v26 = vld [vmem:[%s1 + $0x34] sm:$0xf]
  %v27 = vld [vmem:[%s1 + $0x38] sm:$0xf]
  %v28 = vld [vmem:[%s1 + $0x3c] sm:$0xf]
  %v29 = vld [vmem:[%s1 + $0x40] sm:$0xf]
  %v30 = vld [vmem:[%s1 + $0x44] sm:$0xf]
  %v31 = vld [vmem:[%s1 + $0x48] sm:$0xf]
  %v32 = vld [vmem:[%s1 + $0x4c] sm:$0xf]
  %v33 = vld [vmem:[%s2] sm:$0x1]
  %v34 = vld [vmem:[%s2 + $0x8] sm:$0x1]
  %v35 = vld [vmem:[%s2 + $0x10] sm:$0x1]
  %v36 = vld [vmem:[%s2 + $0x18] sm:$0x1]
  %v37 = vld [vmem:[%s2 + $0x20] sm:$0x1]
  %v38 = vld [vmem:[%s2 + $0x28] sm:$0xf]
  %v39 = vld [vmem:[%s0] sm:$0xf]
  %v40 = vld [vmem:[%s0 + $0x4] sm:$0xf]
  %v43 = vunpack.c.l.b16 %v39
  %v44 = vunpack.c.l.b16 %v40
  %v45 = vpack.c.b16 %v44, %v43
  %vm46 = vcmask 15360
  %v48 = vsel %vm46, %v45, 0
  %vm50 = vcmask 1040384
  %v52 = vsel %vm50, %v17, 0
  %54 = vmatprep.subr.bf16.mxu0 0
  %55 = vmatpush1.bf16.msra.mxu0 %v52
  %56 = vmatprep.subr.bf16.mxu0 0
  %57 = vmatpush1.bf16.msra.mxu0 0
  %58 = vmatprep.subr.bf16.mxu0 0
  %59 = vmatpush1.bf16.msra.mxu0 0
  %60 = vmatprep.subr.bf16.mxu0 0
  %61 = vmatpush1.bf16.msra.mxu0 0
  %62 = vmatprep.subr.bf16.mxu0 0
  %63 = vmatpush1.bf16.msra.mxu0 0
  %64 = vmatprep.subr.bf16.mxu0 0
  %65 = vmatpush1.bf16.msra.mxu0 0
  %66 = vmatprep.subr.bf16.mxu0 0
  %67 = vmatpush1.bf16.msra.mxu0 0
  %68 = vmatprep.subr.bf16.mxu0 0
  %69 = vmatpush1.bf16.msra.mxu0 0
  %70 = vmatprep.subr.bf16.mxu0 0
  %71 = vmatpush1.bf16.msra.mxu0 0
  %72 = vmatprep.subr.bf16.mxu0 0
  %73 = vmatpush1.bf16.msra.mxu0 0
  %74 = vmatprep.subr.bf16.mxu0 0
  %75 = vmatpush1.bf16.msra.mxu0 0
  %76 = vmatprep.subr.bf16.mxu0 0
  %77 = vmatpush1.bf16.msra.mxu0 0
  %78 = vmatprep.subr.bf16.mxu0 0
  %79 = vmatpush1.bf16.msra.mxu0 0
  %80 = vmatprep.subr.bf16.mxu0 0
  %81 = vmatpush1.bf16.msra.mxu0 0
  %82 = vmatprep.subr.bf16.mxu0 0
  %83 = vmatpush1.bf16.msra.mxu0 0
  %84 = vmatprep.subr.bf16.mxu0 0
  %85 = vmatpush1.bf16.msra.mxu0 0
  %86 = vmatprep.mubr.bf16.mxu0 0
  %87 = vmatmul.mubr.bf16.gmra.mrb[0].mxu0 %v48
  %v88 = vpop.f32.mrb[0].mxu0
  %v89 = vadd.f32 0.0, %v88
  %v90 = vpop.f32.mrb[0].mxu0
  %v91 = vpop.f32.mrb[0].mxu0
  %v92 = vadd.f32 0.0, %v91
  %v93 = vpop.f32.mrb[0].mxu0
  %94 = vdwg.mxu0
  %v95 = vpack.c.bf16 %v92, %v89
  %v96 = vlaneseq
  %v97 = vshrl.u32 %v96, 7
  %v98 = vsub.s32 0, %v97
  %v99 = vrot.slane %v33, %v98
  %v102 = vunpack.c.l.b16 %v15
  %v103 = vunpack.c.l.b16 %v16
  %v104 = vpack.c.b16 %v103, %v102
  %vm105 = vcmask 130048
  %v107 = vsel %vm105, %v104, 0
  %109 = vmatprep.subr.bf16.mxu0 0
  %110 = vmatpush1.bf16.msra.mxu0 %v95
  %111 = vmatprep.subr.bf16.mxu0 0
  %112 = vmatpush1.bf16.msra.mxu0 0
  %113 = vmatprep.subr.bf16.mxu0 0
  %114 = vmatpush1.bf16.msra.mxu0 0
  %115 = vmatprep.subr.bf16.mxu0 0
  %116 = vmatpush1.bf16.msra.mxu0 0
  %117 = vmatprep.subr.bf16.mxu0 0
  %118 = vmatpush1.bf16.msra.mxu0 0
  %119 = vmatprep.subr.bf16.mxu0 0
  %120 = vmatpush1.bf16.msra.mxu0 0
  %121 = vmatprep.subr.bf16.mxu0 0
  %122 = vmatpush1.bf16.msra.mxu0 0
  %123 = vmatprep.subr.bf16.mxu0 0
  %124 = vmatpush1.bf16.msra.mxu0 0
  %125 = vmatprep.subr.bf16.mxu0 0
  %126 = vmatpush1.bf16.msra.mxu0 0
  %127 = vmatprep.subr.bf16.mxu0 0
  %128 = vmatpush1.bf16.msra.mxu0 0
  %129 = vmatprep.subr.bf16.mxu0 0
  %130 = vmatpush1.bf16.msra.mxu0 0
  %131 = vmatprep.subr.bf16.mxu0 0
  %132 = vmatpush1.bf16.msra.mxu0 0
  %133 = vmatprep.subr.bf16.mxu0 0
  %134 = vmatpush1.bf16.msra.mxu0 0
  %135 = vmatprep.subr.bf16.mxu0 0
  %136 = vmatpush1.bf16.msra.mxu0 0
  %137 = vmatprep.subr.bf16.mxu0 0
  %138 = vmatpush1.bf16.msra.mxu0 0
  %139 = vmatprep.subr.bf16.mxu0 0
  %140 = vmatpush1.bf16.msra.mxu0 0
  %141 = vmatprep.mubr.bf16.mxu0 0
  %142 = vmatmul.mubr.bf16.gmra.mrb[0].mxu0 %v107
  %v143 = vpop.f32.mrb[0].mxu0
  %v144 = vadd.f32 %v99, %v143
  %v145 = vpop.f32.mrb[0].mxu0
  %v146 = vpop.f32.mrb[0].mxu0
  %v147 = vadd.f32 %v99, %v146
  %v148 = vpop.f32.mrb[0].mxu0
  %149 = vdwg.mxu0
  %v150 = vmax.f32 %v144, 0.0
  %v151 = vmax.f32 %v147, 0.0
  %v152 = vpack.c.bf16 %v151, %v150
  %v157 = vunpack.c.l.b16 %v18
  %v158 = vunpack.c.l.b16 %v19
  %v159 = vunpack.c.l.b16 %v20
  %v160 = vunpack.c.l.b16 %v21
  %v161 = vpack.c.b16 %v158, %v157
  %v162 = vpack.c.b16 %v160, %v159
  %vm165 = vcmask 261120
  %v167 = vsel %vm165, %v152, 0
  %169 = vmatprep.subr.bf16.mxu0 0
  %170 = vmatpush1.bf16.msra.mxu0 %v161
  %171 = vmatprep.subr.bf16.mxu0 0
  %172 = vmatpush1.bf16.msra.mxu0 %v162
  %173 = vmatprep.subr.bf16.mxu0 0
  %174 = vmatpush1.bf16.msra.mxu0 0
  %175 = vmatprep.subr.bf16.mxu0 0
  %176 = vmatpush1.bf16.msra.mxu0 0
  %177 = vmatprep.subr.bf16.mxu0 0
  %178 = vmatpush1.bf16.msra.mxu0 0
  %179 = vmatprep.subr.bf16.mxu0 0
  %180 = vmatpush1.bf16.msra.mxu0 0
  %181 = vmatprep.subr.bf16.mxu0 0
  %182 = vmatpush1.bf16.msra.mxu0 0
  %183 = vmatprep.subr.bf16.mxu0 0
  %184 = vmatpush1.bf16.msra.mxu0 0
  %185 = vmatprep.subr.bf16.mxu0 0
  %186 = vmatpush1.bf16.msra.mxu0 0
  %187 = vmatprep.subr.bf16.mxu0 0
  %188 = vmatpush1.bf16.msra.mxu0 0
  %189 = vmatprep.subr.bf16.mxu0 0
  %190 = vmatpush1.bf16.msra.mxu0 0
  %191 = vmatprep.subr.bf16.mxu0 0
  %192 = vmatpush1.bf16.msra.mxu0 0
  %193 = vmatprep.subr.bf16.mxu0 0
  %194 = vmatpush1.bf16.msra.mxu0 0
  %195 = vmatprep.subr.bf16.mxu0 0
  %196 = vmatpush1.bf16.msra.mxu0 0
  %197 = vmatprep.subr.bf16.mxu0 0
  %198 = vmatpush1.bf16.msra.mxu0 0
  %199 = vmatprep.subr.bf16.mxu0 0
  %200 = vmatpush1.bf16.msra.mxu0 0
  %201 = vmatprep.mubr.bf16.mxu0 0
  %202 = vmatmul.mubr.bf16.gmra.mrb[0].mxu0 %v167
  %v203 = vpop.f32.mrb[0].mxu0
  %v204 = vadd.f32 0.0, %v203
  %v205 = vpop.f32.mrb[0].mxu0
  %v206 = vpop.f32.mrb[0].mxu0
  %v207 = vadd.f32 0.0, %v206
  %v208 = vpop.f32.mrb[0].mxu0
  %209 = vdwg.mxu0
  %v210 = vpack.c.bf16 %v207, %v204
  %v211 = vlaneseq
  %v212 = vshrl.u32 %v211, 7
  %v213 = vsub.s32 0, %v212
  %v214 = vrot.slane %v34, %v213
  %215 = vmatprep.subr.bf16.mxu0 0
  %216 = vmatpush1.bf16.msra.mxu0 %v210
  %217 = vmatprep.subr.bf16.mxu0 0
  %218 = vmatpush1.bf16.msra.mxu0 0
  %219 = vmatprep.subr.bf16.mxu0 0
  %220 = vmatpush1.bf16.msra.mxu0 0
  %221 = vmatprep.subr.bf16.mxu0 0
  %222 = vmatpush1.bf16.msra.mxu0 0
  %223 = vmatprep.subr.bf16.mxu0 0
  %224 = vmatpush1.bf16.msra.mxu0 0
  %225 = vmatprep.subr.bf16.mxu0 0
  %226 = vmatpush1.bf16.msra.mxu0 0
  %227 = vmatprep.subr.bf16.mxu0 0
  %228 = vmatpush1.bf16.msra.mxu0 0
  %229 = vmatprep.subr.bf16.mxu0 0
  %230 = vmatpush1.bf16.msra.mxu0 0
  %231 = vmatprep.subr.bf16.mxu0 0
  %232 = vmatpush1.bf16.msra.mxu0 0
  %233 = vmatprep.subr.bf16.mxu0 0
  %234 = vmatpush1.bf16.msra.mxu0 0
  %235 = vmatprep.subr.bf16.mxu0 0
  %236 = vmatpush1.bf16.msra.mxu0 0
  %237 = vmatprep.subr.bf16.mxu0 0
  %238 = vmatpush1.bf16.msra.mxu0 0
  %239 = vmatprep.subr.bf16.mxu0 0
  %240 = vmatpush1.bf16.msra.mxu0 0
  %241 = vmatprep.subr.bf16.mxu0 0
  %242 = vmatpush1.bf16.msra.mxu0 0
  %243 = vmatprep.subr.bf16.mxu0 0
  %244 = vmatpush1.bf16.msra.mxu0 0
  %245 = vmatprep.subr.bf16.mxu0 0
  %246 = vmatpush1.bf16.msra.mxu0 0
  %247 = vmatprep.mubr.bf16.mxu0 0
  %248 = vmatmul.mubr.bf16.gmra.mrb[0].mxu0 %v107
  %v249 = vpop.f32.mrb[0].mxu0
  %v250 = vadd.f32 %v214, %v249
  %v251 = vpop.f32.mrb[0].mxu0
  %v252 = vpop.f32.mrb[0].mxu0
  %v253 = vadd.f32 %v214, %v252
  %v254 = vpop.f32.mrb[0].mxu0
  %255 = vdwg.mxu0
  %v256 = vpack.c.bf16 %v253, %v250
  %258 = vset.pattern.permute.xlu0 0
  %259 = vperm.xlu0 %258, %v38
  %v260 = vpop.permute.xlu0 %259
  %v263 = vsel %vm105, %v22, 0
  %265 = vmatprep.subr.bf16.mxu0 0
  %266 = vmatpush1.bf16.msra.mxu0 %v256
  %267 = vmatprep.subr.bf16.mxu0 0
  %268 = vmatpush1.bf16.msra.mxu0 0
  %269 = vmatprep.subr.bf16.mxu0 0
  %270 = vmatpush1.bf16.msra.mxu0 0
  %271 = vmatprep.subr.bf16.mxu0 0
  %272 = vmatpush1.bf16.msra.mxu0 0
  %273 = vmatprep.subr.bf16.mxu0 0
  %274 = vmatpush1.bf16.msra.mxu0 0
  %275 = vmatprep.subr.bf16.mxu0 0
  %276 = vmatpush1.bf16.msra.mxu0 0
  %277 = vmatprep.subr.bf16.mxu0 0
  %278 = vmatpush1.bf16.msra.mxu0 0
  %279 = vmatprep.subr.bf16.mxu0 0
  %280 = vmatpush1.bf16.msra.mxu0 0
  %281 = vmatprep.subr.bf16.mxu0 0
  %282 = vmatpush1.bf16.msra.mxu0 0
  %283 = vmatprep.subr.bf16.mxu0 0
  %284 = vmatpush1.bf16.msra.mxu0 0
  %285 = vmatprep.subr.bf16.mxu0 0
  %286 = vmatpush1.bf16.msra.mxu0 0
  %287 = vmatprep.subr.bf16.mxu0 0
  %288 = vmatpush1.bf16.msra.mxu0 0
  %289 = vmatprep.subr.bf16.mxu0 0
  %290 = vmatpush1.bf16.msra.mxu0 0
  %291 = vmatprep.subr.bf16.mxu0 0
  %292 = vmatpush1.bf16.msra.mxu0 0
  %293 = vmatprep.subr.bf16.mxu0 0
  %294 = vmatpush1.bf16.msra.mxu0 0
  %295 = vmatprep.subr.bf16.mxu0 0
  %296 = vmatpush1.bf16.msra.mxu0 0
  %297 = vmatprep.mubr.bf16.mxu0 0
  %298 = vmatmul.mubr.bf16.gmra.mrb[0].mxu0 %v263
  %v299 = vpop.f32.mrb[0].mxu0
  %v300 = vadd.f32 %v260, %v299
  %v301 = vpop.f32.mrb[0].mxu0
  %v302 = vpop.f32.mrb[0].mxu0
  %v303 = vpop.f32.mrb[0].mxu0
  %304 = vdwg.mxu0
  %v305 = vpack.c.bf16 %v300, %v300
  %v307 = vrot.slane %v305, 1
  %v310 = vunpack.c.l.b16 %v25
  %v311 = vunpack.c.l.b16 %v26
  %v312 = vpack.c.b16 %v311, %v310
  %v315 = vsel %vm105, %v307, 0
  %317 = vmatprep.subr.bf16.mxu0 0
  %318 = vmatpush1.bf16.msra.mxu0 %v312
  %319 = vmatprep.subr.bf16.mxu0 0
  %320 = vmatpush1.bf16.msra.mxu0 0
  %321 = vmatprep.subr.bf16.mxu0 0
  %322 = vmatpush1.bf16.msra.mxu0 0
  %323 = vmatprep.subr.bf16.mxu0 0
  %324 = vmatpush1.bf16.msra.mxu0 0
  %325 = vmatprep.subr.bf16.mxu0 0
  %326 = vmatpush1.bf16.msra.mxu0 0
  %327 = vmatprep.subr.bf16.mxu0 0
  %328 = vmatpush1.bf16.msra.mxu0 0
  %329 = vmatprep.subr.bf16.mxu0 0
  %330 = vmatpush1.bf16.msra.mxu0 0
  %331 = vmatprep.subr.bf16.mxu0 0
  %332 = vmatpush1.bf16.msra.mxu0 0
  %333 = vmatprep.subr.bf16.mxu0 0
  %334 = vmatpush1.bf16.msra.mxu0 0
  %335 = vmatprep.subr.bf16.mxu0 0
  %336 = vmatpush1.bf16.msra.mxu0 0
  %337 = vmatprep.subr.bf16.mxu0 0
  %338 = vmatpush1.bf16.msra.mxu0 0
  %339 = vmatprep.subr.bf16.mxu0 0
  %340 = vmatpush1.bf16.msra.mxu0 0
  %341 = vmatprep.subr.bf16.mxu0 0
  %342 = vmatpush1.bf16.msra.mxu0 0
  %343 = vmatprep.subr.bf16.mxu0 0
  %344 = vmatpush1.bf16.msra.mxu0 0
  %345 = vmatprep.subr.bf16.mxu0 0
  %346 = vmatpush1.bf16.msra.mxu0 0
  %347 = vmatprep.subr.bf16.mxu0 0
  %348 = vmatpush1.bf16.msra.mxu0 0
  %349 = vmatprep.mubr.bf16.mxu0 0
  %350 = vmatmul.mubr.bf16.gmra.mrb[0].mxu0 %v315
  %v351 = vpop.f32.mrb[0].mxu0
  %v352 = vadd.f32 0.0, %v351
  %v353 = vpop.f32.mrb[0].mxu0
  %v354 = vpop.f32.mrb[0].mxu0
  %v355 = vpop.f32.mrb[0].mxu0
  %356 = vdwg.mxu0
  %v359 = vunpack.c.l.b16 %v23
  %v360 = vunpack.c.l.b16 %v24
  %v361 = vpack.c.b16 %v360, %v359
  %v364 = vsel %vm105, %v305, 0
  %366 = vmatprep.subr.bf16.mxu0 0
  %367 = vmatpush1.bf16.msra.mxu0 %v361
  %368 = vmatprep.subr.bf16.mxu0 0
  %369 = vmatpush1.bf16.msra.mxu0 0
  %370 = vmatprep.subr.bf16.mxu0 0
  %371 = vmatpush1.bf16.msra.mxu0 0
  %372 = vmatprep.subr.bf16.mxu0 0
  %373 = vmatpush1.bf16.msra.mxu0 0
  %374 = vmatprep.subr.bf16.mxu0 0
  %375 = vmatpush1.bf16.msra.mxu0 0
  %376 = vmatprep.subr.bf16.mxu0 0
  %377 = vmatpush1.bf16.msra.mxu0 0
  %378 = vmatprep.subr.bf16.mxu0 0
  %379 = vmatpush1.bf16.msra.mxu0 0
  %380 = vmatprep.subr.bf16.mxu0 0
  %381 = vmatpush1.bf16.msra.mxu0 0
  %382 = vmatprep.subr.bf16.mxu0 0
  %383 = vmatpush1.bf16.msra.mxu0 0
  %384 = vmatprep.subr.bf16.mxu0 0
  %385 = vmatpush1.bf16.msra.mxu0 0
  %386 = vmatprep.subr.bf16.mxu0 0
  %387 = vmatpush1.bf16.msra.mxu0 0
  %388 = vmatprep.subr.bf16.mxu0 0
  %389 = vmatpush1.bf16.msra.mxu0 0
  %390 = vmatprep.subr.bf16.mxu0 0
  %391 = vmatpush1.bf16.msra.mxu0 0
  %392 = vmatprep.subr.bf16.mxu0 0
  %393 = vmatpush1.bf16.msra.mxu0 0
  %394 = vmatprep.subr.bf16.mxu0 0
  %395 = vmatpush1.bf16.msra.mxu0 0
  %396 = vmatprep.subr.bf16.mxu0 0
  %397 = vmatpush1.bf16.msra.mxu0 0
  %398 = vmatprep.mubr.bf16.mxu0 0
  %399 = vmatmul.mubr.bf16.gmra.mrb[0].mxu0 %v364
  %v400 = vpop.f32.mrb[0].mxu0
  %v401 = vadd.f32 %v352, %v400
  %v402 = vpop.f32.mrb[0].mxu0
  %v403 = vpop.f32.mrb[0].mxu0
  %v404 = vpop.f32.mrb[0].mxu0
  %405 = vdwg.mxu0
  %v406 = vlaneseq
  %v407 = vshrl.u32 %v406, 7
  %v408 = vsub.s32 0, %v407
  %v409 = vrot.slane %v35, %v408
  %v410 = vadd.f32 %v401, %v409
  %vm411 = vcmask 123904
  %412 = vst.msk [vmem:[#allocation2] sm:$0x3] %vm411, %v410
  %414 = vrot.lane.b32.xlu0 %v410, 112
  %v415 = vpop.permute.xlu0 %414
  %417 = vst.msk [vmem:[#allocation2 + $0x2] sm:$0x3] %vm411, %v415
  %418 = vrot.lane.b32.xlu0 %v410, 96
  %v419 = vpop.permute.xlu0 %418
  %421 = vst.msk [vmem:[#allocation2 + $0x4] sm:$0x3] %vm411, %v419
  %422 = vrot.lane.b32.xlu0 %v410, 80
  %v423 = vpop.permute.xlu0 %422
  %425 = vst.msk [vmem:[#allocation2 + $0x6] sm:$0x3] %vm411, %v423
  %426 = vrot.lane.b32.xlu0 %v410, 64
  %v427 = vpop.permute.xlu0 %426
  %429 = vst.msk [vmem:[#allocation2 + $0x8] sm:$0x3] %vm411, %v427
  %430 = vrot.lane.b32.xlu0 %v410, 48
  %v431 = vpop.permute.xlu0 %430
  %433 = vst.msk [vmem:[#allocation2 + $0xa] sm:$0x3] %vm411, %v431
  %434 = vrot.lane.b32.xlu0 %v410, 32
  %v435 = vpop.permute.xlu0 %434
  %437 = vst.msk [vmem:[#allocation2 + $0xc] sm:$0x3] %vm411, %v435
  %438 = vrot.lane.b32.xlu0 %v410, 16
  %v439 = vpop.permute.xlu0 %438
  %441 = vst.msk [vmem:[#allocation2 + $0xe] sm:$0x3] %vm411, %v439
  %v442 = vld [vmem:[#allocation2] sm:$0xff]
  %v443 = vld [vmem:[#allocation2 + $0x8] sm:$0xff]
  %v444 = vpack.c.bf16 %v443, %v442
  %v447 = vunpack.c.l.b16 %v27
  %v448 = vunpack.c.l.b16 %v28
  %v449 = vpack.c.b16 %v448, %v447
  %v452 = vsel %vm105, %v444, 0
  %454 = vmatprep.subr.bf16.mxu0 0
  %455 = vmatpush1.bf16.msra.mxu0 %v449
  %456 = vmatprep.subr.bf16.mxu0 0
  %457 = vmatpush1.bf16.msra.mxu0 0
  %458 = vmatprep.subr.bf16.mxu0 0
  %459 = vmatpush1.bf16.msra.mxu0 0
  %460 = vmatprep.subr.bf16.mxu0 0
  %461 = vmatpush1.bf16.msra.mxu0 0
  %462 = vmatprep.subr.bf16.mxu0 0
  %463 = vmatpush1.bf16.msra.mxu0 0
  %464 = vmatprep.subr.bf16.mxu0 0
  %465 = vmatpush1.bf16.msra.mxu0 0
  %466 = vmatprep.subr.bf16.mxu0 0
  %467 = vmatpush1.bf16.msra.mxu0 0
  %468 = vmatprep.subr.bf16.mxu0 0
  %469 = vmatpush1.bf16.msra.mxu0 0
  %470 = vmatprep.subr.bf16.mxu0 0
  %471 = vmatpush1.bf16.msra.mxu0 0
  %472 = vmatprep.subr.bf16.mxu0 0
  %473 = vmatpush1.bf16.msra.mxu0 0
  %474 = vmatprep.subr.bf16.mxu0 0
  %475 = vmatpush1.bf16.msra.mxu0 0
  %476 = vmatprep.subr.bf16.mxu0 0
  %477 = vmatpush1.bf16.msra.mxu0 0
  %478 = vmatprep.subr.bf16.mxu0 0
  %479 = vmatpush1.bf16.msra.mxu0 0
  %480 = vmatprep.subr.bf16.mxu0 0
  %481 = vmatpush1.bf16.msra.mxu0 0
  %482 = vmatprep.subr.bf16.mxu0 0
  %483 = vmatpush1.bf16.msra.mxu0 0
  %484 = vmatprep.subr.bf16.mxu0 0
  %485 = vmatpush1.bf16.msra.mxu0 0
  %486 = vmatprep.mubr.bf16.mxu0 0
  %487 = vmatmul.mubr.bf16.gmra.mrb[0].mxu0 %v452
  %v488 = vpop.f32.mrb[0].mxu0
  %v489 = vadd.f32 0.0, %v488
  %v490 = vpop.f32.mrb[0].mxu0
  %v491 = vpop.f32.mrb[0].mxu0
  %v492 = vadd.f32 0.0, %v491
  %v493 = vpop.f32.mrb[0].mxu0
  %494 = vdwg.mxu0
  %v495 = vpack.c.bf16 %v492, %v489
  %v496 = vlaneseq
  %v497 = vshrl.u32 %v496, 7
  %v498 = vsub.s32 0, %v497
  %v499 = vrot.slane %v36, %v498
  %500 = vmatprep.subr.bf16.mxu0 0
  %501 = vmatpush1.bf16.msra.mxu0 %v495
  %502 = vmatprep.subr.bf16.mxu0 0
  %503 = vmatpush1.bf16.msra.mxu0 0
  %504 = vmatprep.subr.bf16.mxu0 0
  %505 = vmatpush1.bf16.msra.mxu0 0
  %506 = vmatprep.subr.bf16.mxu0 0
  %507 = vmatpush1.bf16.msra.mxu0 0
  %508 = vmatprep.subr.bf16.mxu0 0
  %509 = vmatpush1.bf16.msra.mxu0 0
  %510 = vmatprep.subr.bf16.mxu0 0
  %511 = vmatpush1.bf16.msra.mxu0 0
  %512 = vmatprep.subr.bf16.mxu0 0
  %513 = vmatpush1.bf16.msra.mxu0 0
  %514 = vmatprep.subr.bf16.mxu0 0
  %515 = vmatpush1.bf16.msra.mxu0 0
  %516 = vmatprep.subr.bf16.mxu0 0
  %517 = vmatpush1.bf16.msra.mxu0 0
  %518 = vmatprep.subr.bf16.mxu0 0
  %519 = vmatpush1.bf16.msra.mxu0 0
  %520 = vmatprep.subr.bf16.mxu0 0
  %521 = vmatpush1.bf16.msra.mxu0 0
  %522 = vmatprep.subr.bf16.mxu0 0
  %523 = vmatpush1.bf16.msra.mxu0 0
  %524 = vmatprep.subr.bf16.mxu0 0
  %525 = vmatpush1.bf16.msra.mxu0 0
  %526 = vmatprep.subr.bf16.mxu0 0
  %527 = vmatpush1.bf16.msra.mxu0 0
  %528 = vmatprep.subr.bf16.mxu0 0
  %529 = vmatpush1.bf16.msra.mxu0 0
  %530 = vmatprep.subr.bf16.mxu0 0
  %531 = vmatpush1.bf16.msra.mxu0 0
  %532 = vmatprep.mubr.bf16.mxu0 0
  %533 = vmatmul.mubr.bf16.gmra.mrb[0].mxu0 %v107
  %v534 = vpop.f32.mrb[0].mxu0
  %v535 = vadd.f32 %v499, %v534
  %v536 = vpop.f32.mrb[0].mxu0
  %v537 = vpop.f32.mrb[0].mxu0
  %v538 = vadd.f32 %v499, %v537
  %v539 = vpop.f32.mrb[0].mxu0
  %540 = vdwg.mxu0
  %v541 = vmax.f32 %v535, 0.0
  %v542 = vmax.f32 %v538, 0.0
  %v543 = vpack.c.bf16 %v542, %v541
  %v548 = vunpack.c.l.b16 %v29
  %v549 = vunpack.c.l.b16 %v30
  %v550 = vunpack.c.l.b16 %v31
  %v551 = vunpack.c.l.b16 %v32
  %v552 = vpack.c.b16 %v549, %v548
  %v553 = vpack.c.b16 %v551, %v550
  %v557 = vsel %vm165, %v543, 0
  %559 = vmatprep.subr.bf16.mxu0 0
  %560 = vmatpush1.bf16.msra.mxu0 %v552
  %561 = vmatprep.subr.bf16.mxu0 0
  %562 = vmatpush1.bf16.msra.mxu0 %v553
  %563 = vmatprep.subr.bf16.mxu0 0
  %564 = vmatpush1.bf16.msra.mxu0 0
  %565 = vmatprep.subr.bf16.mxu0 0
  %566 = vmatpush1.bf16.msra.mxu0 0
  %567 = vmatprep.subr.bf16.mxu0 0
  %568 = vmatpush1.bf16.msra.mxu0 0
  %569 = vmatprep.subr.bf16.mxu0 0
  %570 = vmatpush1.bf16.msra.mxu0 0
  %571 = vmatprep.subr.bf16.mxu0 0
  %572 = vmatpush1.bf16.msra.mxu0 0
  %573 = vmatprep.subr.bf16.mxu0 0
  %574 = vmatpush1.bf16.msra.mxu0 0
  %575 = vmatprep.subr.bf16.mxu0 0
  %576 = vmatpush1.bf16.msra.mxu0 0
  %577 = vmatprep.subr.bf16.mxu0 0
  %578 = vmatpush1.bf16.msra.mxu0 0
  %579 = vmatprep.subr.bf16.mxu0 0
  %580 = vmatpush1.bf16.msra.mxu0 0
  %581 = vmatprep.subr.bf16.mxu0 0
  %582 = vmatpush1.bf16.msra.mxu0 0
  %583 = vmatprep.subr.bf16.mxu0 0
  %584 = vmatpush1.bf16.msra.mxu0 0
  %585 = vmatprep.subr.bf16.mxu0 0
  %586 = vmatpush1.bf16.msra.mxu0 0
  %587 = vmatprep.subr.bf16.mxu0 0
  %588 = vmatpush1.bf16.msra.mxu0 0
  %589 = vmatprep.subr.bf16.mxu0 0
  %590 = vmatpush1.bf16.msra.mxu0 0
  %591 = vmatprep.mubr.bf16.mxu0 0
  %592 = vmatmul.mubr.bf16.gmra.mrb[0].mxu0 %v557
  %v593 = vpop.f32.mrb[0].mxu0
  %v594 = vadd.f32 0.0, %v593
  %v595 = vpop.f32.mrb[0].mxu0
  %v596 = vpop.f32.mrb[0].mxu0
  %v597 = vadd.f32 0.0, %v596
  %v598 = vpop.f32.mrb[0].mxu0
  %599 = vdwg.mxu0
  %v600 = vpack.c.bf16 %v597, %v594
  %v601 = vlaneseq
  %v602 = vshrl.u32 %v601, 7
  %v603 = vsub.s32 0, %v602
  %v604 = vrot.slane %v37, %v603
  %605 = vmatprep.subr.bf16.mxu0 0
  %606 = vmatpush1.bf16.msra.mxu0 %v600
  %607 = vmatprep.subr.bf16.mxu0 0
  %608 = vmatpush1.bf16.msra.mxu0 0
  %609 = vmatprep.subr.bf16.mxu0 0
  %610 = vmatpush1.bf16.msra.mxu0 0
  %611 = vmatprep.subr.bf16.mxu0 0
  %612 = vmatpush1.bf16.msra.mxu0 0
  %613 = vmatprep.subr.bf16.mxu0 0
  %614 = vmatpush1.bf16.msra.mxu0 0
  %615 = vmatprep.subr.bf16.mxu0 0
  %616 = vmatpush1.bf16.msra.mxu0 0
  %617 = vmatprep.subr.bf16.mxu0 0
  %618 = vmatpush1.bf16.msra.mxu0 0
  %619 = vmatprep.subr.bf16.mxu0 0
  %620 = vmatpush1.bf16.msra.mxu0 0
  %621 = vmatprep.subr.bf16.mxu0 0
  %622 = vmatpush1.bf16.msra.mxu0 0
  %623 = vmatprep.subr.bf16.mxu0 0
  %624 = vmatpush1.bf16.msra.mxu0 0
  %625 = vmatprep.subr.bf16.mxu0 0
  %626 = vmatpush1.bf16.msra.mxu0 0
  %627 = vmatprep.subr.bf16.mxu0 0
  %628 = vmatpush1.bf16.msra.mxu0 0
  %629 = vmatprep.subr.bf16.mxu0 0
  %630 = vmatpush1.bf16.msra.mxu0 0
  %631 = vmatprep.subr.bf16.mxu0 0
  %632 = vmatpush1.bf16.msra.mxu0 0
  %633 = vmatprep.subr.bf16.mxu0 0
  %634 = vmatpush1.bf16.msra.mxu0 0
  %635 = vmatprep.subr.bf16.mxu0 0
  %636 = vmatpush1.bf16.msra.mxu0 0
  %637 = vmatprep.mubr.bf16.mxu0 0
  %638 = vmatmul.mubr.bf16.gmra.mrb[0].mxu0 %v107
  %v639 = vpop.f32.mrb[0].mxu0
  %v640 = vadd.f32 %v604, %v639
  %v641 = vpop.f32.mrb[0].mxu0
  %v642 = vpop.f32.mrb[0].mxu0
  %v643 = vadd.f32 %v604, %v642
  %v644 = vpop.f32.mrb[0].mxu0
  %645 = vdwg.mxu0
  %646 = vst.msk [vmem:[%s3] sm:$0xff] %vm46, %v640
  %647 = vst.msk [vmem:[%s3 + $0x8] sm:$0xff] %vm46, %v643
  // Predicated region
  $region14: #{graph_autoencoder_forward.1} parent=0 // pred_check
    _
  $region15: #{graph_autoencoder_forward.1} parent=0 // pred_check_branch
    %649 = sbr.rel (0) target = $region17
  $region16: #{graph_autoencoder_forward.1} parent=0 // pred_region
    _
  $region17: #{graph_autoencoder_forward.1} parent=0 // pred_fallthru
    _
  // Predicated region
  $region18: #{graph_autoencoder_forward.1} parent=0 // pred_check
    _
  $region19: #{graph_autoencoder_forward.1} parent=0 // pred_check_branch
    %651 = sbr.rel (0) target = $region21
  $region20: #{graph_autoencoder_forward.1} parent=0 // pred_region
    _
  $region21: #{graph_autoencoder_forward.1} parent=0 // pred_fallthru
    _

</llo_original>
